<compile_context>
chip_gen: v6e
topology: v6e:2x2x1
jax: 0.10.0
libtpu: 0.0.40
codegen_flags: <defaults>
</compile_context>

<pallas_src>
import functools

import jax
import jax.numpy as jnp
from jax.experimental import pallas as pl
from jax.experimental.pallas import tpu as pltpu


def _round_up(n, m):
    return ((n + m - 1) // m) * m


def _vmem_capacity_bytes():
    try:
        return int(pltpu.get_tpu_info().vmem_capacity_bytes)
    except Exception:
        return 64 << 20  # conservative fallback (v7x per-core VMEM)


def _ffn_kernel(x_ref, w1_ref, w2_ref, w3_ref, o_ref, *scratch):
    # x_ref : (tm, E)   token tile (compute dtype)
    # w1/w2 : (E, th)   canonical [K, N] gate / up projection tiles
    # w3    : (th, E)   canonical [K, N] down projection tile
    # o_ref : (tm, E)   output tile, resident across the hidden grid axis
    # scratch: optional (tm, E) f32 accumulator (only when o_ref is not f32)
    acc_ref = scratch[0] if scratch else o_ref
    h_idx = pl.program_id(1)

    @pl.when(h_idx == 0)
    def _():
        acc_ref[...] = jnp.zeros_like(acc_ref)

    x = x_ref[...]
    # Gate / up projections: canonical [M,K]x[K,N] MXU matmuls, f32 accumulation.
    h1 = jnp.dot(x, w1_ref[...], preferred_element_type=jnp.float32)   # (tm, th)
    h2 = jnp.dot(x, w2_ref[...], preferred_element_type=jnp.float32)   # (tm, th)
    # SiLU(h1) * h2 in f32.
    h = (h1 * jax.nn.sigmoid(h1)) * h2
    # Partial down-projection, accumulated into the resident f32 block.
    acc_ref[...] += jnp.dot(h.astype(x.dtype), w3_ref[...],
                            preferred_element_type=jnp.float32)

    if scratch:  # static: separate f32 accumulator -> cast out on the last step
        @pl.when(h_idx == pl.num_programs(1) - 1)
        def _():
            o_ref[...] = acc_ref[...].astype(o_ref.dtype)


def _select_tiles(tokens, E, H, comp_item, out_item, sep_acc, sub,
                  tm_max, th_max, budget):
    """Largest token tile first (weight reuse dominates), then largest hidden
    tile that fits the VMEM budget (blocks are double-buffered + intermediates)."""
    tm_cap = max(sub, min(tm_max, _round_up(tokens, sub)))
    tm_cands = sorted({c for c in (1024, 512, 256, 128, 64, 32, 16, 8, tm_cap)
                       if sub <= c <= tm_cap}, reverse=True)
    th_cap = max(128, min(th_max, H))
    th_cands = [c for c in range(th_cap - th_cap % 128, 0, -128) if H % c == 0]

    def need(tm_c, th_c):
        return (3 * th_c * E * comp_item * 2        # w1/w2/w3 blocks, double-buffered
                + tm_c * E * comp_item * 2          # x block, double-buffered
                + tm_c * E * out_item * 2           # out block, double-buffered
                + (tm_c * E * 4 if sep_acc else 0)  # separate f32 accumulator
                + 4 * tm_c * th_c * 4)              # h1/h2/h f32 + cast temporaries

    for tm_c in tm_cands:
        for th_c in th_cands:
            if need(tm_c, th_c) <= budget:
                return tm_c, th_c, need(tm_c, th_c)
    tm_c, th_c = sub, 128                           # last-resort minimal tiles
    return tm_c, th_c, need(tm_c, th_c)


@functools.partial(jax.jit, static_argnames=("compute_dtype", "tm", "th"))
def feed_forward_nn(x, w1, w2, w3, *, compute_dtype=jnp.bfloat16, tm=512, th=1024):
    """SwiGLU FFN.  x: [B, S, E]; w1, w2: [H, E]; w3: [E, H] (PyTorch layout).

    compute_dtype: dtype of the matmul *operands* (accumulation is always f32).
    Pass jnp.float32 or None to keep the input dtype end-to-end.
    """
    B, S, E = x.shape
    H = w1.shape[0]
    assert w1.shape == (H, E) and w2.shape == (H, E) and w3.shape == (E, H)
    assert E % 128 == 0 and H % 128 == 0, "embed/hidden dims must be lane-aligned"

    out_dtype = jnp.dtype(x.dtype)
    comp_dtype = jnp.dtype(out_dtype if compute_dtype is None else compute_dtype)

    # One-time canonical-layout ([K, N]) weights; hoist to load time if reused.
    w1t = w1.T.astype(comp_dtype)   # (E, H)
    w2t = w2.T.astype(comp_dtype)   # (E, H)
    w3t = w3.T.astype(comp_dtype)   # (H, E)

    tokens = B * S
    comp_item = comp_dtype.itemsize
    out_item = out_dtype.itemsize
    sub = max(8, 32 // comp_item)                       # sublane multiple 8/16/32
    sep_acc = out_dtype != jnp.dtype(jnp.float32)       # f32 out -> accumulate in o_ref

    cap = _vmem_capacity_bytes()
    budget = max(cap - (8 << 20), 8 << 20)
    tm_eff, th_eff, vmem_need = _select_tiles(
        tokens, E, H, comp_item, out_item, sep_acc, sub, tm, th, budget)

    tokens_p = _round_up(tokens, tm_eff)
    x2d = x.reshape(tokens, E).astype(comp_dtype)
    if tokens_p != tokens:
        x2d = jnp.pad(x2d, ((0, tokens_p - tokens), (0, 0)))

    n_tok_tiles = tokens_p // tm_eff
    vmem_limit = int(min(cap - (4 << 20), max(int(vmem_need * 1.25), 16 << 20)))

    cost = pl.CostEstimate(
        flops=6 * tokens_p * E * H,
        transcendentals=tokens_p * H,
        # Weights are re-streamed from HBM once per token tile.
        bytes_accessed=int(n_tok_tiles * 3 * E * H * comp_item
                           + tokens_p * E * (comp_item + out_item)),
    )

    scratch_shapes = [pltpu.VMEM((tm_eff, E), jnp.float32)] if sep_acc else []

    out2d = pl.pallas_call(
        _ffn_kernel,
        out_shape=jax.ShapeDtypeStruct((tokens_p, E), out_dtype),
        grid_spec=pltpu.PrefetchScalarGridSpec(
            num_scalar_prefetch=0,
            grid=(n_tok_tiles, H // th_eff),
            in_specs=[
                pl.BlockSpec((tm_eff, E), lambda i, h: (i, 0)),    # x tile
                pl.BlockSpec((E, th_eff), lambda i, h: (0, h)),    # W1^T tile
                pl.BlockSpec((E, th_eff), lambda i, h: (0, h)),    # W2^T tile
                pl.BlockSpec((th_eff, E), lambda i, h: (h, 0)),    # W3^T tile
            ],
            out_specs=pl.BlockSpec((tm_eff, E), lambda i, h: (i, 0)),
            scratch_shapes=scratch_shapes,
        ),
        compiler_params=pltpu.CompilerParams(
            dimension_semantics=("parallel", "arbitrary"),
            vmem_limit_bytes=vmem_limit,
        ),
        cost_estimate=cost,
    )(x2d, w1t, w2t, w3t)

    return out2d[:tokens].reshape(B, S, E)


def feed_forward_ref(x, w1, w2, w3):
    h1 = jnp.einsum("bse,he->bsh", x, w1)
    h2 = jnp.einsum("bse,he->bsh", x, w2)
    h = (h1 * jax.nn.sigmoid(h1)) * h2
    return jnp.einsum("bsh,eh->bse", h, w3)


if __name__ == "__main__":
    # cfg: embed_dim=128, hidden_dim=256, dtype=float32
    E, H = 128, 256
    dtype = jnp.float32

    key = jax.random.PRNGKey(0)
    kx, k1, k2, k3, kx2 = jax.random.split(key, 5)

    # PyTorch nn.Linear weight layout: [out_features, in_features].
    w1 = jax.random.normal(k1, (H, E), dtype=dtype) * 0.05
    w2 = jax.random.normal(k2, (H, E), dtype=dtype) * 0.05
    w3 = jax.random.normal(k3, (E, H), dtype=dtype) * 0.05

    # Case 1: standard batch/seq, dtype-faithful f32 compute path.
    x = jax.random.normal(kx, (2, 8, E), dtype=dtype)
    ref = jax.block_until_ready(feed_forward_ref(x, w1, w2, w3))
    out_f32 = jax.block_until_ready(
        feed_forward_nn(x, w1, w2, w3, compute_dtype=jnp.float32))
    assert out_f32.shape == x.shape
    # TPU matmuls use reduced (bf16-pass) precision at default settings.
    assert jnp.allclose(out_f32, ref, atol=5e-3, rtol=5e-2), "mismatch (f32 path)"

    # Case 1b: default bf16-operand path (f32 accumulation) -> looser tolerance.
    out_bf = jax.block_until_ready(feed_forward_nn(x, w1, w2, w3))
    assert out_bf.shape == x.shape
    assert jnp.allclose(out_bf, ref, atol=1e-2, rtol=5e-2), "mismatch (bf16 path)"

    # Case 2: ragged token count (3*5 = 15 tokens) exercises the padding path.
    x2 = jax.random.normal(kx2, (3, 5, E), dtype=dtype)
    ref2 = jax.block_until_ready(feed_forward_ref(x2, w1, w2, w3))
    out2 = jax.block_until_ready(feed_forward_nn(x2, w1, w2, w3))
    assert out2.shape == x2.shape
    assert jnp.allclose(out2, ref2, atol=1e-2, rtol=5e-2), "mismatch (ragged path)"

    print("KERNEL_OK")
</pallas_src>

<mosaic_0001>
module attributes {stable_mosaic.version = 11 : i64} {
  func.func @_ffn_kernel(%arg0: i32, %arg1: i32, %arg2: memref<16x128xf32, #tpu.memory_space<vmem>>, %arg3: memref<128x256xf32, #tpu.memory_space<vmem>>, %arg4: memref<128x256xf32, #tpu.memory_space<vmem>>, %arg5: memref<256x128xf32, #tpu.memory_space<vmem>>, %arg6: memref<16x128xf32, #tpu.memory_space<vmem>>) attributes {dimension_semantics = [#tpu.dimension_semantics<parallel>, #tpu.dimension_semantics<arbitrary>], iteration_bounds = array<i64: 1, 1>, scalar_prefetch = 0 : i64, scratch_operands = 0 : i64, tpu.core_type = #tpu.core_type<tc>, window_params = [{transform_indices = @transform_0, window_bounds = array<i64: 16, 128>}, {transform_indices = @transform_1, window_bounds = array<i64: 128, 256>}, {transform_indices = @transform_2, window_bounds = array<i64: 128, 256>}, {transform_indices = @transform_3, window_bounds = array<i64: 256, 128>}, {transform_indices = @transform_4, window_bounds = array<i64: 16, 128>}]} {
    %c0_i32 = arith.constant 0 : i32
    %0 = arith.cmpi eq, %arg1, %c0_i32 : i32
    %1 = arith.extui %0 : i1 to i32
    %c0_i32_0 = arith.constant 0 : i32
    %2 = arith.cmpi ne, %1, %c0_i32_0 : i32
    scf.if %2 {
      %cst_15 = arith.constant 0.000000e+00 : f32
      %20 = vector.broadcast %cst_15 : f32 to vector<16x128xf32>
      %c0_16 = arith.constant 0 : index
      %c0_17 = arith.constant 0 : index
      %21 = vector.load %arg6[%c0_16, %c0_17] : memref<16x128xf32, #tpu.memory_space<vmem>>, vector<16x128xf32>
      tpu.vector_store %arg6[%c0_16, %c0_17], %20 {strides = array<i32>} : memref<16x128xf32, #tpu.memory_space<vmem>>, vector<16x128xf32>,
    } else {
    }
    %c0 = arith.constant 0 : index
    %c0_1 = arith.constant 0 : index
    %3 = vector.load %arg2[%c0, %c0_1] : memref<16x128xf32, #tpu.memory_space<vmem>>, vector<16x128xf32>
    %c0_2 = arith.constant 0 : index
    %c0_3 = arith.constant 0 : index
    %4 = vector.load %arg3[%c0_2, %c0_3] : memref<128x256xf32, #tpu.memory_space<vmem>>, vector<128x256xf32>
    %cst = arith.constant dense<0.000000e+00> : vector<16x256xf32>
    %5 = tpu.matmul %3, %4, %cst {dimension_numbers = #tpu.dot_dimension_numbers<[1], [0], [0], [1], [0, 0, 1, 1], [], []>} : vector<16x128xf32>, vector<128x256xf32>, vector<16x256xf32> -> vector<16x256xf32>
    %c0_4 = arith.constant 0 : index
    %c0_5 = arith.constant 0 : index
    %6 = vector.load %arg4[%c0_4, %c0_5] : memref<128x256xf32, #tpu.memory_space<vmem>>, vector<128x256xf32>
    %cst_6 = arith.constant dense<0.000000e+00> : vector<16x256xf32>
    %7 = tpu.matmul %3, %6, %cst_6 {dimension_numbers = #tpu.dot_dimension_numbers<[1], [0], [0], [1], [0, 0, 1, 1], [], []>} : vector<16x128xf32>, vector<128x256xf32>, vector<16x256xf32> -> vector<16x256xf32>
    %8 = arith.negf %5 : vector<16x256xf32>
    %9 = math.exp %8 : vector<16x256xf32>
    %cst_7 = arith.constant 1.000000e+00 : f32
    %10 = vector.broadcast %cst_7 : f32 to vector<16x256xf32>
    %11 = arith.addf %10, %9 : vector<16x256xf32>
    %12 = arith.divf %10, %11 : vector<16x256xf32>
    %13 = arith.mulf %5, %12 : vector<16x256xf32>
    %14 = arith.mulf %13, %7 : vector<16x256xf32>
    %c0_8 = arith.constant 0 : index
    %c0_9 = arith.constant 0 : index
    %15 = vector.load %arg6[%c0_8, %c0_9] : memref<16x128xf32, #tpu.memory_space<vmem>>, vector<16x128xf32>
    %c0_10 = arith.constant 0 : index
    %c0_11 = arith.constant 0 : index
    %16 = vector.load %arg5[%c0_10, %c0_11] : memref<256x128xf32, #tpu.memory_space<vmem>>, vector<256x128xf32>
    %cst_12 = arith.constant dense<0.000000e+00> : vector<16x128xf32>
    %17 = tpu.matmul %14, %16, %cst_12 {dimension_numbers = #tpu.dot_dimension_numbers<[1], [0], [0], [1], [0, 0, 1, 1], [], []>} : vector<16x256xf32>, vector<256x128xf32>, vector<16x128xf32> -> vector<16x128xf32>
    %18 = arith.addf %15, %17 : vector<16x128xf32>
    %c0_13 = arith.constant 0 : index
    %c0_14 = arith.constant 0 : index
    %19 = vector.load %arg6[%c0_13, %c0_14] : memref<16x128xf32, #tpu.memory_space<vmem>>, vector<16x128xf32>
    tpu.vector_store %arg6[%c0_13, %c0_14], %18 {strides = array<i32>} : memref<16x128xf32, #tpu.memory_space<vmem>>, vector<16x128xf32>,
    return
  }
  func.func @transform_0(%arg0: i32, %arg1: i32) -> (i32, i32) {
    %c0_i32 = arith.constant 0 : i32
    %c0_i32_0 = arith.constant 0 : i32
    return %arg0, %c0_i32 : i32, i32
  }
  func.func @transform_1(%arg0: i32, %arg1: i32) -> (i32, i32) {
    %c0_i32 = arith.constant 0 : i32
    %c0_i32_0 = arith.constant 0 : i32
    return %c0_i32, %arg1 : i32, i32
  }
  func.func @transform_2(%arg0: i32, %arg1: i32) -> (i32, i32) {
    %c0_i32 = arith.constant 0 : i32
    %c0_i32_0 = arith.constant 0 : i32
    return %c0_i32, %arg1 : i32, i32
  }
  func.func @transform_3(%arg0: i32, %arg1: i32) -> (i32, i32) {
    %c0_i32 = arith.constant 0 : i32
    %c0_i32_0 = arith.constant 0 : i32
    return %arg1, %c0_i32 : i32, i32
  }
  func.func @transform_4(%arg0: i32, %arg1: i32) -> (i32, i32) {
    %c0_i32 = arith.constant 0 : i32
    %c0_i32_0 = arith.constant 0 : i32
    return %arg0, %c0_i32 : i32, i32
  }
}

</mosaic_0001>

<llo_original>
// kernel: feed_forward_nn.1
$region0: #{feed_forward_nn.1}
  #allocation0 [shape = 'u32[]', space=smem, size = 0x4, offset = 0x4, fixed_abs, tag = 'smem constant byte address 0x4 - core index']
  #allocation1 [shape = 'u32[144,128]{1,0:T(1,128)}', space=vmem, size = 0x12000, scoped, tag = 'internal scratch']
  %s0 = inlined_call_operand.vmem [shape: f32[16,128], index: 0, kind: input, shape index: {}]
  %s1 = inlined_call_operand.vmem [shape: f32[128,256], index: 1, kind: input, shape index: {}]
  %s2 = inlined_call_operand.vmem [shape: f32[128,256], index: 2, kind: input, shape index: {}]
  %s3 = inlined_call_operand.vmem [shape: f32[256,128], index: 3, kind: input, shape index: {}]
  %s4 = inlined_call_operand.hbm [shape: f32[16,128], index: 4, kind: output, shape index: {}]
  %s5 = sld [smem:[#allocation0]]
  $region30: #{feed_forward_nn.1} parent=0
    _
  %s7 = ssub.s32 1, %s5
  %s8 = scalar_select 0, %s7, %s5
  $region1: #{feed_forward_nn.1} parent=0
    #allocation2 [shape = 'u8[8192]{0}', space=vmem, size = 0x2000, scoped, tag = 'output window, operand 0, single buffered']
    #allocation3 [shape = 's32[1]{0}', space=sflag, size = 0x4, scoped, tag = 'scoped memory for feed_forward_nn.1']
    %9 = vsyncpa [#allocation3], 0
    // Predicated region
    $region2: #{feed_forward_nn.1} parent=1 // pred_check
      _
    $region3: #{feed_forward_nn.1} parent=1 // pred_check_branch
      %11 = sbr.rel (0) target = $region5
    $region4: #{feed_forward_nn.1} parent=1 // pred_region
      _
    $region5: #{feed_forward_nn.1} parent=1 // pred_fallthru
      _
    // Predicated region
    $region6: #{feed_forward_nn.1} parent=1 // pred_check
      _
    $region7: #{feed_forward_nn.1} parent=1 // pred_check_branch
      %13 = sbr.rel (0) target = $region9
    $region8: #{feed_forward_nn.1} parent=1 // pred_region
      _
    $region9: #{feed_forward_nn.1} parent=1 // pred_fallthru
      _
    // Predicated region
    $region10: #{feed_forward_nn.1} parent=1 // pred_check
      _
    $region11: #{feed_forward_nn.1} parent=1 // pred_check_branch
      %15 = sbr.rel (0) target = $region13
    $region12: #{feed_forward_nn.1} parent=1 // pred_region
      _
    $region13: #{feed_forward_nn.1} parent=1 // pred_fallthru
      _
    // Predicated region
    $region14: #{feed_forward_nn.1} parent=1 // pred_check
      _
    $region15: #{feed_forward_nn.1} parent=1 // pred_check_branch
      %17 = sbr.rel (0) target = $region17
    $region16: #{feed_forward_nn.1} parent=1 // pred_region
      _
    $region17: #{feed_forward_nn.1} parent=1 // pred_fallthru
      _
    %p18 = scmp.eq.s32.totalorder 0, 0
    // Predicated region
    $region18: #{feed_forward_nn.1} parent=1 // pred_check
      %p19 = pneg %p18
    $region19: #{feed_forward_nn.1} parent=1 // pred_check_branch
      %21 = sbr.rel (%p19) target = $region21
    $region20: #{feed_forward_nn.1} parent=1 // pred_region
      %22 = vst [vmem:[#allocation2] sm:$0xff] 0.0
      %23 = vst [vmem:[#allocation2 + $0x8] sm:$0xff] 0.0
    $region21: #{feed_forward_nn.1} parent=1 // pred_fallthru
      _
    %v24 = vld [vmem:[%s0] sm:$0xff]
    %v25 = vld [vmem:[%s0 + $0x8] sm:$0xff]
    %v26 = vld [vmem:[%s1] sm:$0xff]
    %v27 = vld [vmem:[%s1 + $0x8] sm:$0xff]
    %v28 = vld [vmem:[%s1 + $0x10] sm:$0xff]
    %v29 = vld [vmem:[%s1 + $0x18] sm:$0xff]
    %v30 = vld [vmem:[%s1 + $0x20] sm:$0xff]
    %v31 = vld [vmem:[%s1 + $0x28] sm:$0xff]
    %v32 = vld [vmem:[%s1 + $0x30] sm:$0xff]
    %v33 = vld [vmem:[%s1 + $0x38] sm:$0xff]
    %v34 = vld [vmem:[%s1 + $0x40] sm:$0xff]
    %v35 = vld [vmem:[%s1 + $0x48] sm:$0xff]
    %v36 = vld [vmem:[%s1 + $0x50] sm:$0xff]
    %v37 = vld [vmem:[%s1 + $0x58] sm:$0xff]
    %v38 = vld [vmem:[%s1 + $0x60] sm:$0xff]
    %v39 = vld [vmem:[%s1 + $0x68] sm:$0xff]
    %v40 = vld [vmem:[%s1 + $0x70] sm:$0xff]
    %v41 = vld [vmem:[%s1 + $0x78] sm:$0xff]
    %v42 = vld [vmem:[%s1 + $0x80] sm:$0xff]
    %v43 = vld [vmem:[%s1 + $0x88] sm:$0xff]
    %v44 = vld [vmem:[%s1 + $0x90] sm:$0xff]
    %v45 = vld [vmem:[%s1 + $0x98] sm:$0xff]
    %v46 = vld [vmem:[%s1 + $0xa0] sm:$0xff]
    %v47 = vld [vmem:[%s1 + $0xa8] sm:$0xff]
    %v48 = vld [vmem:[%s1 + $0xb0] sm:$0xff]
    %v49 = vld [vmem:[%s1 + $0xb8] sm:$0xff]
    %v50 = vld [vmem:[%s1 + $0xc0] sm:$0xff]
    %v51 = vld [vmem:[%s1 + $0xc8] sm:$0xff]
    %v52 = vld [vmem:[%s1 + $0xd0] sm:$0xff]
    %v53 = vld [vmem:[%s1 + $0xd8] sm:$0xff]
    %v54 = vld [vmem:[%s1 + $0xe0] sm:$0xff]
    %v55 = vld [vmem:[%s1 + $0xe8] sm:$0xff]
    %v56 = vld [vmem:[%s1 + $0xf0] sm:$0xff]
    %v57 = vld [vmem:[%s1 + $0xf8] sm:$0xff]
    %58 = vmatprep.subr.mxu0 %v57
    %59 = vmatpush1.msra.mxu0 %v56
    %60 = vmatprep.subr.mxu0 %v55
    %61 = vmatpush1.msra.mxu0 %v54
    %62 = vmatprep.subr.mxu0 %v53
    %63 = vmatpush1.msra.mxu0 %v52
    %64 = vmatprep.subr.mxu0 %v51
    %65 = vmatpush1.msra.mxu0 %v50
    %66 = vmatprep.subr.mxu0 %v49
    %67 = vmatpush1.msra.mxu0 %v48
    %68 = vmatprep.subr.mxu0 %v47
    %69 = vmatpush1.msra.mxu0 %v46
    %70 = vmatprep.subr.mxu0 %v45
    %71 = vmatpush1.msra.mxu0 %v44
    %72 = vmatprep.subr.mxu0 %v43
    %73 = vmatpush1.msra.mxu0 %v42
    %74 = vmatprep.subr.mxu0 %v41
    %75 = vmatpush1.msra.mxu0 %v40
    %76 = vmatprep.subr.mxu0 %v39
    %77 = vmatpush1.msra.mxu0 %v38
    %78 = vmatprep.subr.mxu0 %v37
    %79 = vmatpush1.msra.mxu0 %v36
    %80 = vmatprep.subr.mxu0 %v35
    %81 = vmatpush1.msra.mxu0 %v34
    %82 = vmatprep.subr.mxu0 %v33
    %83 = vmatpush1.msra.mxu0 %v32
    %84 = vmatprep.subr.mxu0 %v31
    %85 = vmatpush1.msra.mxu0 %v30
    %86 = vmatprep.subr.mxu0 %v29
    %87 = vmatpush1.msra.mxu0 %v28
    %88 = vmatprep.subr.mxu0 %v27
    %89 = vmatpush1.msra.mxu0 %v26
    %90 = vmatprep.subr.mxu0 0.0
    %91 = vmatpush2.msra.mxu0 0.0
    %92 = vmatprep.subr.mxu0 0.0
    %93 = vmatpush2.msra.mxu0 0.0
    %94 = vmatprep.subr.mxu0 0.0
    %95 = vmatpush2.msra.mxu0 0.0
    %96 = vmatprep.subr.mxu0 0.0
    %97 = vmatpush2.msra.mxu0 0.0
    %98 = vmatprep.subr.mxu0 0.0
    %99 = vmatpush2.msra.mxu0 0.0
    %100 = vmatprep.subr.mxu0 0.0
    %101 = vmatpush2.msra.mxu0 0.0
    %102 = vmatprep.subr.mxu0 0.0
    %103 = vmatpush2.msra.mxu0 0.0
    %104 = vmatprep.subr.mxu0 0.0
    %105 = vmatpush2.msra.mxu0 0.0
    %106 = vmatprep.subr.mxu0 0.0
    %107 = vmatpush2.msra.mxu0 0.0
    %108 = vmatprep.subr.mxu0 0.0
    %109 = vmatpush2.msra.mxu0 0.0
    %110 = vmatprep.subr.mxu0 0.0
    %111 = vmatpush2.msra.mxu0 0.0
    %112 = vmatprep.subr.mxu0 0.0
    %113 = vmatpush2.msra.mxu0 0.0
    %114 = vmatprep.subr.mxu0 0.0
    %115 = vmatpush2.msra.mxu0 0.0
    %116 = vmatprep.subr.mxu0 0.0
    %117 = vmatpush2.msra.mxu0 0.0
    %118 = vmatprep.subr.mxu0 0.0
    %119 = vmatpush2.msra.mxu0 0.0
    %120 = vmatprep.subr.mxu0 0.0
    %121 = vmatpush2.msra.mxu0 0.0
    %122 = vmatprep.mubr.f32.mxu0 0.0
    %123 = vmatmul.mubr.f32.gmra.mxu0 %v24
    %v124 = vpop.f32.mrf.mxu0
    %v125 = vadd.f32 0.0, %v124
    %v126 = vpop.f32.mrf.mxu0
    %v127 = vadd.f32 0.0, %v126
    %128 = vmatprep.mubr.f32.mxu0 0.0
    %129 = vmatmul.mubr.f32.gmra.mxu0 %v25
    %v130 = vpop.f32.mrf.mxu0
    %v131 = vadd.f32 0.0, %v130
    %v132 = vpop.f32.mrf.mxu0
    %v133 = vadd.f32 0.0, %v132
    %134 = vdwg.mxu0
    %v135 = vld [vmem:[%s2] sm:$0xff]
    %v136 = vld [vmem:[%s2 + $0x8] sm:$0xff]
    %v137 = vld [vmem:[%s2 + $0x10] sm:$0xff]
    %v138 = vld [vmem:[%s2 + $0x18] sm:$0xff]
    %v139 = vld [vmem:[%s2 + $0x20] sm:$0xff]
    %v140 = vld [vmem:[%s2 + $0x28] sm:$0xff]
    %v141 = vld [vmem:[%s2 + $0x30] sm:$0xff]
    %v142 = vld [vmem:[%s2 + $0x38] sm:$0xff]
    %v143 = vld [vmem:[%s2 + $0x40] sm:$0xff]
    %v144 = vld [vmem:[%s2 + $0x48] sm:$0xff]
    %v145 = vld [vmem:[%s2 + $0x50] sm:$0xff]
    %v146 = vld [vmem:[%s2 + $0x58] sm:$0xff]
    %v147 = vld [vmem:[%s2 + $0x60] sm:$0xff]
    %v148 = vld [vmem:[%s2 + $0x68] sm:$0xff]
    %v149 = vld [vmem:[%s2 + $0x70] sm:$0xff]
    %v150 = vld [vmem:[%s2 + $0x78] sm:$0xff]
    %v151 = vld [vmem:[%s2 + $0x80] sm:$0xff]
    %v152 = vld [vmem:[%s2 + $0x88] sm:$0xff]
    %v153 = vld [vmem:[%s2 + $0x90] sm:$0xff]
    %v154 = vld [vmem:[%s2 + $0x98] sm:$0xff]
    %v155 = vld [vmem:[%s2 + $0xa0] sm:$0xff]
    %v156 = vld [vmem:[%s2 + $0xa8] sm:$0xff]
    %v157 = vld [vmem:[%s2 + $0xb0] sm:$0xff]
    %v158 = vld [vmem:[%s2 + $0xb8] sm:$0xff]
    %v159 = vld [vmem:[%s2 + $0xc0] sm:$0xff]
    %v160 = vld [vmem:[%s2 + $0xc8] sm:$0xff]
    %v161 = vld [vmem:[%s2 + $0xd0] sm:$0xff]
    %v162 = vld [vmem:[%s2 + $0xd8] sm:$0xff]
    %v163 = vld [vmem:[%s2 + $0xe0] sm:$0xff]
    %v164 = vld [vmem:[%s2 + $0xe8] sm:$0xff]
    %v165 = vld [vmem:[%s2 + $0xf0] sm:$0xff]
    %v166 = vld [vmem:[%s2 + $0xf8] sm:$0xff]
    %167 = vmatprep.subr.mxu0 %v166
    %168 = vmatpush1.msra.mxu0 %v165
    %169 = vmatprep.subr.mxu0 %v164
    %170 = vmatpush1.msra.mxu0 %v163
    %171 = vmatprep.subr.mxu0 %v162
    %172 = vmatpush1.msra.mxu0 %v161
    %173 = vmatprep.subr.mxu0 %v160
    %174 = vmatpush1.msra.mxu0 %v159
    %175 = vmatprep.subr.mxu0 %v158
    %176 = vmatpush1.msra.mxu0 %v157
    %177 = vmatprep.subr.mxu0 %v156
    %178 = vmatpush1.msra.mxu0 %v155
    %179 = vmatprep.subr.mxu0 %v154
    %180 = vmatpush1.msra.mxu0 %v153
    %181 = vmatprep.subr.mxu0 %v152
    %182 = vmatpush1.msra.mxu0 %v151
    %183 = vmatprep.subr.mxu0 %v150
    %184 = vmatpush1.msra.mxu0 %v149
    %185 = vmatprep.subr.mxu0 %v148
    %186 = vmatpush1.msra.mxu0 %v147
    %187 = vmatprep.subr.mxu0 %v146
    %188 = vmatpush1.msra.mxu0 %v145
    %189 = vmatprep.subr.mxu0 %v144
    %190 = vmatpush1.msra.mxu0 %v143
    %191 = vmatprep.subr.mxu0 %v142
    %192 = vmatpush1.msra.mxu0 %v141
    %193 = vmatprep.subr.mxu0 %v140
    %194 = vmatpush1.msra.mxu0 %v139
    %195 = vmatprep.subr.mxu0 %v138
    %196 = vmatpush1.msra.mxu0 %v137
    %197 = vmatprep.subr.mxu0 %v136
    %198 = vmatpush1.msra.mxu0 %v135
    %199 = vmatprep.subr.mxu0 0.0
    %200 = vmatpush2.msra.mxu0 0.0
    %201 = vmatprep.subr.mxu0 0.0
    %202 = vmatpush2.msra.mxu0 0.0
    %203 = vmatprep.subr.mxu0 0.0
    %204 = vmatpush2.msra.mxu0 0.0
    %205 = vmatprep.subr.mxu0 0.0
    %206 = vmatpush2.msra.mxu0 0.0
    %207 = vmatprep.subr.mxu0 0.0
    %208 = vmatpush2.msra.mxu0 0.0
    %209 = vmatprep.subr.mxu0 0.0
    %210 = vmatpush2.msra.mxu0 0.0
    %211 = vmatprep.subr.mxu0 0.0
    %212 = vmatpush2.msra.mxu0 0.0
    %213 = vmatprep.subr.mxu0 0.0
    %214 = vmatpush2.msra.mxu0 0.0
    %215 = vmatprep.subr.mxu0 0.0
    %216 = vmatpush2.msra.mxu0 0.0
    %217 = vmatprep.subr.mxu0 0.0
    %218 = vmatpush2.msra.mxu0 0.0
    %219 = vmatprep.subr.mxu0 0.0
    %220 = vmatpush2.msra.mxu0 0.0
    %221 = vmatprep.subr.mxu0 0.0
    %222 = vmatpush2.msra.mxu0 0.0
    %223 = vmatprep.subr.mxu0 0.0
    %224 = vmatpush2.msra.mxu0 0.0
    %225 = vmatprep.subr.mxu0 0.0
    %226 = vmatpush2.msra.mxu0 0.0
    %227 = vmatprep.subr.mxu0 0.0
    %228 = vmatpush2.msra.mxu0 0.0
    %229 = vmatprep.subr.mxu0 0.0
    %230 = vmatpush2.msra.mxu0 0.0
    %231 = vmatprep.mubr.f32.mxu0 0.0
    %232 = vmatmul.mubr.f32.gmra.mxu0 %v24
    %v233 = vpop.f32.mrf.mxu0
    %v234 = vadd.f32 0.0, %v233
    %v235 = vpop.f32.mrf.mxu0
    %v236 = vadd.f32 0.0, %v235
    %237 = vmatprep.mubr.f32.mxu0 0.0
    %238 = vmatmul.mubr.f32.gmra.mxu0 %v25
    %v239 = vpop.f32.mrf.mxu0
    %v240 = vadd.f32 0.0, %v239
    %v241 = vpop.f32.mrf.mxu0
    %v242 = vadd.f32 0.0, %v241
    %243 = vdwg.mxu0
    %v244 = vxor.u32 %v125, 2147483648
    %v245 = vxor.u32 %v127, 2147483648
    %v246 = vxor.u32 %v131, 2147483648
    %v247 = vxor.u32 %v133, 2147483648
    %v248 = vmul.f32 %v244, 1.442695
    %v249 = vpow.pop %v248
    %v250 = vmul.f32 %v245, 1.442695
    %v251 = vpow.pop %v250
    %v252 = vmul.f32 %v246, 1.442695
    %v253 = vpow.pop %v252
    %v254 = vmul.f32 %v247, 1.442695
    %v255 = vpow.pop %v254
    %v256 = vadd.f32 %v249, 1.0
    %v257 = vadd.f32 %v251, 1.0
    %v258 = vadd.f32 %v253, 1.0
    %v259 = vadd.f32 %v255, 1.0
    %v260 = vrcp.pop %v256
    %v261 = vmul.f32 1.0, %v260
    %v262 = vrcp.pop %v257
    %v263 = vmul.f32 1.0, %v262
    %v264 = vrcp.pop %v258
    %v265 = vmul.f32 1.0, %v264
    %v266 = vrcp.pop %v259
    %v267 = vmul.f32 1.0, %v266
    %v268 = vmul.f32 %v125, %v261
    %v269 = vmul.f32 %v127, %v263
    %v270 = vmul.f32 %v131, %v265
    %v271 = vmul.f32 %v133, %v267
    %v272 = vmul.f32 %v268, %v234
    %v273 = vmul.f32 %v269, %v236
    %v274 = vmul.f32 %v270, %v240
    %v275 = vmul.f32 %v271, %v242
    %v276 = vld [vmem:[#allocation2] sm:$0xff]
    %v277 = vld [vmem:[#allocation2 + $0x8] sm:$0xff]
    %v278 = vld [vmem:[%s3] sm:$0xff]
    %v279 = vld [vmem:[%s3 + $0x8] sm:$0xff]
    %v280 = vld [vmem:[%s3 + $0x10] sm:$0xff]
    %v281 = vld [vmem:[%s3 + $0x18] sm:$0xff]
    %v282 = vld [vmem:[%s3 + $0x20] sm:$0xff]
    %v283 = vld [vmem:[%s3 + $0x28] sm:$0xff]
    %v284 = vld [vmem:[%s3 + $0x30] sm:$0xff]
    %v285 = vld [vmem:[%s3 + $0x38] sm:$0xff]
    %v286 = vld [vmem:[%s3 + $0x40] sm:$0xff]
    %v287 = vld [vmem:[%s3 + $0x48] sm:$0xff]
    %v288 = vld [vmem:[%s3 + $0x50] sm:$0xff]
    %v289 = vld [vmem:[%s3 + $0x58] sm:$0xff]
    %v290 = vld [vmem:[%s3 + $0x60] sm:$0xff]
    %v291 = vld [vmem:[%s3 + $0x68] sm:$0xff]
    %v292 = vld [vmem:[%s3 + $0x70] sm:$0xff]
    %v293 = vld [vmem:[%s3 + $0x78] sm:$0xff]
    %v294 = vld [vmem:[%s3 + $0x80] sm:$0xff]
    %v295 = vld [vmem:[%s3 + $0x88] sm:$0xff]
    %v296 = vld [vmem:[%s3 + $0x90] sm:$0xff]
    %v297 = vld [vmem:[%s3 + $0x98] sm:$0xff]
    %v298 = vld [vmem:[%s3 + $0xa0] sm:$0xff]
    %v299 = vld [vmem:[%s3 + $0xa8] sm:$0xff]
    %v300 = vld [vmem:[%s3 + $0xb0] sm:$0xff]
    %v301 = vld [vmem:[%s3 + $0xb8] sm:$0xff]
    %v302 = vld [vmem:[%s3 + $0xc0] sm:$0xff]
    %v303 = vld [vmem:[%s3 + $0xc8] sm:$0xff]
    %v304 = vld [vmem:[%s3 + $0xd0] sm:$0xff]
    %v305 = vld [vmem:[%s3 + $0xd8] sm:$0xff]
    %v306 = vld [vmem:[%s3 + $0xe0] sm:$0xff]
    %v307 = vld [vmem:[%s3 + $0xe8] sm:$0xff]
    %v308 = vld [vmem:[%s3 + $0xf0] sm:$0xff]
    %v309 = vld [vmem:[%s3 + $0xf8] sm:$0xff]
    %310 = vmatprep.subr.mxu0 0.0
    %311 = vmatpush1.msra.mxu0 %v293
    %312 = vmatprep.subr.mxu0 0.0
    %313 = vmatpush1.msra.mxu0 %v292
    %314 = vmatprep.subr.mxu0 0.0
    %315 = vmatpush1.msra.mxu0 %v291
    %316 = vmatprep.subr.mxu0 0.0
    %317 = vmatpush1.msra.mxu0 %v290
    %318 = vmatprep.subr.mxu0 0.0
    %319 = vmatpush1.msra.mxu0 %v289
    %320 = vmatprep.subr.mxu0 0.0
    %321 = vmatpush1.msra.mxu0 %v288
    %322 = vmatprep.subr.mxu0 0.0
    %323 = vmatpush1.msra.mxu0 %v287
    %324 = vmatprep.subr.mxu0 0.0
    %325 = vmatpush1.msra.mxu0 %v286
    %326 = vmatprep.subr.mxu0 0.0
    %327 = vmatpush1.msra.mxu0 %v285
    %328 = vmatprep.subr.mxu0 0.0
    %329 = vmatpush1.msra.mxu0 %v284
    %330 = vmatprep.subr.mxu0 0.0
    %331 = vmatpush1.msra.mxu0 %v283
    %332 = vmatprep.subr.mxu0 0.0
    %333 = vmatpush1.msra.mxu0 %v282
    %334 = vmatprep.subr.mxu0 0.0
    %335 = vmatpush1.msra.mxu0 %v281
    %336 = vmatprep.subr.mxu0 0.0
    %337 = vmatpush1.msra.mxu0 %v280
    %338 = vmatprep.subr.mxu0 0.0
    %339 = vmatpush1.msra.mxu0 %v279
    %340 = vmatprep.subr.mxu0 0.0
    %341 = vmatpush1.msra.mxu0 %v278
    %342 = vmatprep.subr.mxu0 0.0
    %343 = vmatpush2.msra.mxu0 %v309
    %344 = vmatprep.subr.mxu0 0.0
    %345 = vmatpush2.msra.mxu0 %v308
    %346 = vmatprep.subr.mxu0 0.0
    %347 = vmatpush2.msra.mxu0 %v307
    %348 = vmatprep.subr.mxu0 0.0
    %349 = vmatpush2.msra.mxu0 %v306
    %350 = vmatprep.subr.mxu0 0.0
    %351 = vmatpush2.msra.mxu0 %v305
    %352 = vmatprep.subr.mxu0 0.0
    %353 = vmatpush2.msra.mxu0 %v304
    %354 = vmatprep.subr.mxu0 0.0
    %355 = vmatpush2.msra.mxu0 %v303
    %356 = vmatprep.subr.mxu0 0.0
    %357 = vmatpush2.msra.mxu0 %v302
    %358 = vmatprep.subr.mxu0 0.0
    %359 = vmatpush2.msra.mxu0 %v301
    %360 = vmatprep.subr.mxu0 0.0
    %361 = vmatpush2.msra.mxu0 %v300
    %362 = vmatprep.subr.mxu0 0.0
    %363 = vmatpush2.msra.mxu0 %v299
    %364 = vmatprep.subr.mxu0 0.0
    %365 = vmatpush2.msra.mxu0 %v298
    %366 = vmatprep.subr.mxu0 0.0
    %367 = vmatpush2.msra.mxu0 %v297
    %368 = vmatprep.subr.mxu0 0.0
    %369 = vmatpush2.msra.mxu0 %v296
    %370 = vmatprep.subr.mxu0 0.0
    %371 = vmatpush2.msra.mxu0 %v295
    %372 = vmatprep.subr.mxu0 0.0
    %373 = vmatpush2.msra.mxu0 %v294
    %374 = vmatprep.mubr.f32.mxu0 %v273
    %375 = vmatmul.mubr.f32.gmra.mxu0 %v272
    %v376 = vpop.f32.mrf.mxu0
    %v377 = vadd.f32 0.0, %v376
    %v378 = vpop.f32.mrf.mxu0
    %379 = vmatprep.mubr.f32.mxu0 %v275
    %380 = vmatmul.mubr.f32.gmra.mxu0 %v274
    %v381 = vpop.f32.mrf.mxu0
    %v382 = vadd.f32 0.0, %v381
    %v383 = vpop.f32.mrf.mxu0
    %384 = vdwg.mxu0
    %v385 = vadd.f32 %v276, %v377
    %v386 = vadd.f32 %v277, %v382
    %387 = vst [vmem:[#allocation2] sm:$0xff] %v385
    %388 = vst [vmem:[#allocation2 + $0x8] sm:$0xff] %v386
    // Predicated region
    $region22: #{feed_forward_nn.1} parent=1 // pred_check
      _
    $region23: #{feed_forward_nn.1} parent=1 // pred_check_branch
      %390 = sbr.rel (0) target = $region25
    $region24: #{feed_forward_nn.1} parent=1 // pred_region
      %s392 = ssub.s32 256, 256
      %393 = vsyncadd [#allocation3], %s392
      %s394 = sshll.u32 [#allocation2], 4
      %s395 = int_to_ptr.vmem [resolvable:$true] %s394
      %400 = dma.vmem_to_hbm [thread:$0]  %s395, 256, %s4, [#allocation3], 128, 128, 8
    $region25: #{feed_forward_nn.1} parent=1 // pred_fallthru
      _
    // Predicated region
    $region26: #{feed_forward_nn.1} parent=1 // pred_check
      _
    $region27: #{feed_forward_nn.1} parent=1 // pred_check_branch
      %402 = sbr.rel (0) target = $region29
    $region28: #{feed_forward_nn.1} parent=1 // pred_region
      %403 = dma.done [#allocation3], 256
    $region29: #{feed_forward_nn.1} parent=1 // pred_fallthru
      _
    %404 = vsyncpa [#allocation3], 1

</llo_original>
